<compile_context>
chip_gen: v6e
topology: v6e:2x2x1
jax: 0.10.0
libtpu: 0.0.40
codegen_flags: <defaults>
</compile_context>

<pallas_src>
import jax
import jax.numpy as jnp
from jax.experimental import pallas as pl
from jax.experimental.pallas import tpu as pltpu

HIDDEN = 256
IN_DIM = 3
OUT_DIM = 1
KSIZE = 3
BN_EPS = 1e-5
BT = 8          # batch rows per grid step (sublane-aligned)


# ---------------------------------------------------------------------------
# Fused kernel: conv1d(3->256,k=3,pad=1) [+BN1] -> PReLU -> avg-pool(L)
#               -> fc1[+BN2] -> PReLU -> fc2[+BN3] -> PReLU -> (fc3·fc4 folded)
# One grid step handles BT whole batch rows (full L), so the pool never mixes
# batch elements and no cross-step accumulator is needed.
# ---------------------------------------------------------------------------
def dffnn_fused_kernel(x_ref, wc_ref, bc_ref, alpha_ref,
                       w1_ref, b1_ref, w2_ref, b2_ref, w34_ref, b34_ref,
                       o_ref):
    BT_ = x_ref.shape[0]
    L = x_ref.shape[1] - 2            # x block carries the conv halo (padding=1)
    C = x_ref.shape[2]
    H = bc_ref.shape[-1]
    alpha = alpha_ref[...]            # (1, H) PReLU slope, broadcasts on lanes (f32)

    xb = x_ref[...].astype(jnp.bfloat16)               # (BT, L+2, C)

    # Conv1d as three accumulating MXU taps on shifted input slices (f32 accum).
    h = jnp.zeros((BT_ * L, H), jnp.float32)
    for k in range(KSIZE):
        xk = xb[:, k:k + L, :].reshape(BT_ * L, C)      # tap k -> x[t + k - 1]
        h = h + jnp.dot(xk, wc_ref[k], preferred_element_type=jnp.float32)
    h = h + bc_ref[...]                                 # conv bias (BN1 folded in)
    h = jnp.where(h >= 0.0, h, h * alpha)               # PReLU; Dropout = identity

    # AdaptiveAvgPool1d(1): mean over L per batch row.
    p = jnp.mean(h.reshape(BT_, L, H), axis=1)          # (BT, H) f32

    # fc1 (+BN2 folded) -> PReLU -> fc2 (+BN3 folded) -> PReLU
    z = jnp.dot(p.astype(jnp.bfloat16), w1_ref[...],
                preferred_element_type=jnp.float32) + b1_ref[...]
    z = jnp.where(z >= 0.0, z, z * alpha)
    z = jnp.dot(z.astype(jnp.bfloat16), w2_ref[...],
                preferred_element_type=jnp.float32) + b2_ref[...]
    z = jnp.where(z >= 0.0, z, z * alpha)

    # fc3·fc4 folded offline to a single (H,)->1 projection; computed on the VPU
    # (broadcast-multiply + lane reduction) instead of an N=1 MXU matmul.
    o_ref[...] = jnp.sum(z * w34_ref[...], axis=-1, keepdims=True) + b34_ref[...]


# ---------------------------------------------------------------------------
# Wrapper
# ---------------------------------------------------------------------------
def dffnn_forward(x, params):
    B, L, C = x.shape
    assert C == IN_DIM
    b_pad = ((B + BT - 1) // BT) * BT
    # Pad L by 1 on each side (conv padding=1 halo) and pad batch to the row tile.
    x_p = jnp.pad(x, ((0, b_pad - B), (1, 1), (0, 0)))

    def wspec(shape):
        return pl.BlockSpec(shape, lambda i, _s=shape: (0,) * len(_s))

    out = pl.pallas_call(
        dffnn_fused_kernel,
        out_shape=jax.ShapeDtypeStruct((b_pad, OUT_DIM), jnp.float32),
        grid=(b_pad // BT,),
        in_specs=[
            pl.BlockSpec((BT, L + 2, IN_DIM), lambda i: (i, 0, 0)),  # x (with halo)
            wspec((KSIZE, IN_DIM, HIDDEN)),   # conv weight, bf16, BN1 folded
            wspec((1, HIDDEN)),               # conv bias, f32
            wspec((1, HIDDEN)),               # PReLU alpha (broadcast vector), f32
            wspec((HIDDEN, HIDDEN)),          # fc1 weight, bf16, BN2 folded
            wspec((1, HIDDEN)),               # fc1 bias, f32
            wspec((HIDDEN, HIDDEN)),          # fc2 weight, bf16, BN3 folded
            wspec((1, HIDDEN)),               # fc2 bias, f32
            wspec((1, HIDDEN)),               # fc3·fc4 folded weight (row), f32
            wspec((1, 1)),                    # fc3·fc4 folded bias, f32
        ],
        out_specs=pl.BlockSpec((BT, OUT_DIM), lambda i: (i, 0)),
        compiler_params=pltpu.CompilerParams(
            dimension_semantics=("parallel",),          # shard batch tiles across TCs (v7x)
            vmem_limit_bytes=32 * 1024 * 1024,          # generous; per-step footprint << this
        ),
    )(x_p, params["wc"], params["bc"], params["alpha"],
      params["w1"], params["b1"], params["w2"], params["b2"],
      params["w34"], params["b34"])
    return out[:B]


# ---------------------------------------------------------------------------
# Deterministic synthetic parameters (PyTorch-default-style init) + offline folds
# ---------------------------------------------------------------------------
def init_params(key):
    ks = jax.random.split(key, 10)

    def uniform(k, shape, fan_in):
        bound = 1.0 / float(fan_in) ** 0.5
        return jax.random.uniform(k, shape, jnp.float32, -bound, bound)

    conv_w = uniform(ks[0], (HIDDEN, IN_DIM, KSIZE), IN_DIM * KSIZE)  # torch (O, Cin, K)
    conv_b = uniform(ks[1], (HIDDEN,), IN_DIM * KSIZE)
    fc1_w = uniform(ks[2], (HIDDEN, HIDDEN), HIDDEN)                  # torch (out, in)
    fc1_b = uniform(ks[3], (HIDDEN,), HIDDEN)
    fc2_w = uniform(ks[4], (HIDDEN, HIDDEN), HIDDEN)
    fc2_b = uniform(ks[5], (HIDDEN,), HIDDEN)
    fc3_w = uniform(ks[6], (HIDDEN, HIDDEN), HIDDEN)
    fc3_b = uniform(ks[7], (HIDDEN,), HIDDEN)
    fc4_w = uniform(ks[8], (OUT_DIM, HIDDEN), HIDDEN)
    fc4_b = uniform(ks[9], (OUT_DIM,), HIDDEN)

    # Eval-mode BatchNorm1d (PyTorch defaults: gamma=1, beta=0, mean=0, var=1).
    ones = jnp.ones((HIDDEN,), jnp.float32)
    zeros = jnp.zeros((HIDDEN,), jnp.float32)

    def fold_bn(gamma, beta, mean, var):
        scale = gamma / jnp.sqrt(var + BN_EPS)
        shift = beta - mean * scale
        return scale, shift

    s1, t1 = fold_bn(ones, zeros, zeros, ones)
    s2, t2 = fold_bn(ones, zeros, zeros, ones)
    s3, t3 = fold_bn(ones, zeros, zeros, ones)

    # Fold BN1 into the conv; lay the weight out as (K, Cin, H) so tap k is wc[k].
    wc = jnp.transpose(conv_w, (2, 1, 0)) * s1[None, None, :]          # (K, Cin, H)
    bc = (s1 * conv_b + t1).reshape(1, HIDDEN)

    # Fold BN2/BN3 into fc1/fc2 (column = output feature).
    w1 = fc1_w.T * s2[None, :]
    b1 = (s2 * fc1_b + t2).reshape(1, HIDDEN)
    w2 = fc2_w.T * s3[None, :]
    b2 = (s3 * fc2_b + t3).reshape(1, HIDDEN)

    # Fold fc3·fc4 (no nonlinearity between them):
    #   out = (z @ W3.T + b3) @ W4.T + b4 = z @ (W3.T @ W4.T) + (b3 @ W4.T + b4)
    w34_col = fc3_w.T @ fc4_w.T                                        # (H, 1)
    w34 = w34_col.reshape(1, HIDDEN)                                   # row vector
    b34 = (fc3_b @ fc4_w.T + fc4_b).reshape(1, 1)

    alpha = jnp.full((1, HIDDEN), 0.25, jnp.float32)   # nn.PReLU() default, broadcast

    kernel_params = dict(
        wc=wc.astype(jnp.bfloat16), bc=bc, alpha=alpha,
        w1=w1.astype(jnp.bfloat16), b1=b1,
        w2=w2.astype(jnp.bfloat16), b2=b2,
        w34=w34, b34=b34,
    )
    ref_params = dict(wc=wc, bc=bc, w1=w1, b1=b1, w2=w2, b2=b2,
                      w34=w34, b34=b34, alpha=0.25)
    return kernel_params, ref_params


# Pure-JAX f32 reference (same eval-mode semantics, unquantized weights).
def dffnn_reference(x, rp):
    B, L, _ = x.shape
    prelu = lambda t: jnp.where(t >= 0, t, rp["alpha"] * t)
    xp = jnp.pad(x, ((0, 0), (1, 1), (0, 0)))
    h = sum(xp[:, k:k + L, :].reshape(B * L, IN_DIM) @ rp["wc"][k]
            for k in range(KSIZE)) + rp["bc"]
    h = prelu(h)
    p = jnp.mean(h.reshape(B, L, HIDDEN), axis=1)
    z = prelu(p @ rp["w1"] + rp["b1"])
    z = prelu(z @ rp["w2"] + rp["b2"])
    return jnp.sum(z * rp["w34"], axis=-1, keepdims=True) + rp["b34"]


if __name__ == "__main__":
    key = jax.random.PRNGKey(0)
    pkey, xkey = jax.random.split(key)
    kparams, rparams = init_params(pkey)

    B, L = 2, 8
    x = jax.random.normal(xkey, (B, L, IN_DIM), jnp.float32)   # module input: (B, L, input_dim)

    out = jax.block_until_ready(dffnn_forward(x, kparams))
    ref = dffnn_reference(x, rparams)

    assert out.shape == (B, OUT_DIM), out.shape
    assert jnp.allclose(out, ref, atol=2e-2, rtol=2e-2), (out, ref)
    print("KERNEL_OK")
</pallas_src>

<mosaic_0001>
module attributes {stable_mosaic.version = 11 : i64} {
  func.func @dffnn_fused_kernel(%arg0: i32, %arg1: memref<8x10x3xf32, #tpu.memory_space<vmem>>, %arg2: memref<3x3x256xbf16, #tpu.memory_space<vmem>>, %arg3: memref<1x256xf32, #tpu.memory_space<vmem>>, %arg4: memref<1x256xf32, #tpu.memory_space<vmem>>, %arg5: memref<256x256xbf16, #tpu.memory_space<vmem>>, %arg6: memref<1x256xf32, #tpu.memory_space<vmem>>, %arg7: memref<256x256xbf16, #tpu.memory_space<vmem>>, %arg8: memref<1x256xf32, #tpu.memory_space<vmem>>, %arg9: memref<1x256xf32, #tpu.memory_space<vmem>>, %arg10: memref<1x1xf32, #tpu.memory_space<vmem>>, %arg11: memref<8x1xf32, #tpu.memory_space<vmem>>) attributes {dimension_semantics = [#tpu.dimension_semantics<parallel>], iteration_bounds = array<i64: 1>, scalar_prefetch = 0 : i64, scratch_operands = 0 : i64, tpu.core_type = #tpu.core_type<tc>, window_params = [{transform_indices = @transform_0, window_bounds = array<i64: 8, 10, 3>}, {pipeline_mode = #tpu.pipeline_mode<synchronous>, transform_indices = @transform_1, window_bounds = array<i64: 3, 3, 256>}, {pipeline_mode = #tpu.pipeline_mode<synchronous>, transform_indices = @transform_2, window_bounds = array<i64: 1, 256>}, {pipeline_mode = #tpu.pipeline_mode<synchronous>, transform_indices = @transform_3, window_bounds = array<i64: 1, 256>}, {pipeline_mode = #tpu.pipeline_mode<synchronous>, transform_indices = @transform_4, window_bounds = array<i64: 256, 256>}, {pipeline_mode = #tpu.pipeline_mode<synchronous>, transform_indices = @transform_5, window_bounds = array<i64: 1, 256>}, {pipeline_mode = #tpu.pipeline_mode<synchronous>, transform_indices = @transform_6, window_bounds = array<i64: 256, 256>}, {pipeline_mode = #tpu.pipeline_mode<synchronous>, transform_indices = @transform_7, window_bounds = array<i64: 1, 256>}, {pipeline_mode = #tpu.pipeline_mode<synchronous>, transform_indices = @transform_8, window_bounds = array<i64: 1, 256>}, {pipeline_mode = #tpu.pipeline_mode<synchronous>, transform_indices = @transform_9, window_bounds = array<i64: 1, 1>}, {transform_indices = @transform_10, window_bounds = array<i64: 8, 1>}]} {
    %c0 = arith.constant 0 : index
    %c0_0 = arith.constant 0 : index
    %0 = vector.load %arg4[%c0, %c0_0] : memref<1x256xf32, #tpu.memory_space<vmem>>, vector<1x256xf32>
    %c0_1 = arith.constant 0 : index
    %c0_2 = arith.constant 0 : index
    %c0_3 = arith.constant 0 : index
    %1 = vector.load %arg1[%c0_1, %c0_2, %c0_3] : memref<8x10x3xf32, #tpu.memory_space<vmem>>, vector<8x10x3xf32>
    %2 = arith.truncf %1 : vector<8x10x3xf32> to vector<8x10x3xbf16>
    %cst = arith.constant 0.000000e+00 : f32
    %3 = vector.broadcast %cst : f32 to vector<64x256xf32>
    %4 = vector.extract_strided_slice %2 {offsets = [0, 0, 0], sizes = [8, 8, 3], strides = [1, 1, 1]} : vector<8x10x3xbf16> to vector<8x8x3xbf16>
    %5 = vector.shape_cast %4 : vector<8x8x3xbf16> to vector<64x3xbf16>
    %c0_4 = arith.constant 0 : index
    %c0_5 = arith.constant 0 : index
    %c0_6 = arith.constant 0 : index
    %6 = vector.load %arg2[%c0_4, %c0_5, %c0_6] : memref<3x3x256xbf16, #tpu.memory_space<vmem>>, vector<1x3x256xbf16>
    %7 = vector.shape_cast %6 : vector<1x3x256xbf16> to vector<3x256xbf16>
    %cst_7 = arith.constant dense<0.000000e+00> : vector<64x256xf32>
    %8 = tpu.matmul %5, %7, %cst_7 {dimension_numbers = #tpu.dot_dimension_numbers<[1], [0], [0], [1], [0, 0, 1, 1], [], []>} : vector<64x3xbf16>, vector<3x256xbf16>, vector<64x256xf32> -> vector<64x256xf32>
    %9 = arith.addf %3, %8 : vector<64x256xf32>
    %10 = vector.extract_strided_slice %2 {offsets = [0, 1, 0], sizes = [8, 8, 3], strides = [1, 1, 1]} : vector<8x10x3xbf16> to vector<8x8x3xbf16>
    %11 = vector.shape_cast %10 : vector<8x8x3xbf16> to vector<64x3xbf16>
    %c1 = arith.constant 1 : index
    %c0_8 = arith.constant 0 : index
    %c0_9 = arith.constant 0 : index
    %12 = vector.load %arg2[%c1, %c0_8, %c0_9] : memref<3x3x256xbf16, #tpu.memory_space<vmem>>, vector<1x3x256xbf16>
    %13 = vector.shape_cast %12 : vector<1x3x256xbf16> to vector<3x256xbf16>
    %cst_10 = arith.constant dense<0.000000e+00> : vector<64x256xf32>
    %14 = tpu.matmul %11, %13, %cst_10 {dimension_numbers = #tpu.dot_dimension_numbers<[1], [0], [0], [1], [0, 0, 1, 1], [], []>} : vector<64x3xbf16>, vector<3x256xbf16>, vector<64x256xf32> -> vector<64x256xf32>
    %15 = arith.addf %9, %14 : vector<64x256xf32>
    %16 = vector.extract_strided_slice %2 {offsets = [0, 2, 0], sizes = [8, 8, 3], strides = [1, 1, 1]} : vector<8x10x3xbf16> to vector<8x8x3xbf16>
    %17 = vector.shape_cast %16 : vector<8x8x3xbf16> to vector<64x3xbf16>
    %c2 = arith.constant 2 : index
    %c0_11 = arith.constant 0 : index
    %c0_12 = arith.constant 0 : index
    %18 = vector.load %arg2[%c2, %c0_11, %c0_12] : memref<3x3x256xbf16, #tpu.memory_space<vmem>>, vector<1x3x256xbf16>
    %19 = vector.shape_cast %18 : vector<1x3x256xbf16> to vector<3x256xbf16>
    %cst_13 = arith.constant dense<0.000000e+00> : vector<64x256xf32>
    %20 = tpu.matmul %17, %19, %cst_13 {dimension_numbers = #tpu.dot_dimension_numbers<[1], [0], [0], [1], [0, 0, 1, 1], [], []>} : vector<64x3xbf16>, vector<3x256xbf16>, vector<64x256xf32> -> vector<64x256xf32>
    %21 = arith.addf %15, %20 : vector<64x256xf32>
    %c0_14 = arith.constant 0 : index
    %c0_15 = arith.constant 0 : index
    %22 = vector.load %arg3[%c0_14, %c0_15] : memref<1x256xf32, #tpu.memory_space<vmem>>, vector<1x256xf32>
    %23 = vector.broadcast %22 : vector<1x256xf32> to vector<64x256xf32>
    %24 = arith.addf %21, %23 : vector<64x256xf32>
    %cst_16 = arith.constant 0.000000e+00 : f32
    %25 = vector.broadcast %cst_16 : f32 to vector<64x256xf32>
    %26 = arith.cmpf oge, %24, %25 : vector<64x256xf32>
    %27 = vector.broadcast %0 : vector<1x256xf32> to vector<64x256xf32>
    %28 = arith.mulf %24, %27 : vector<64x256xf32>
    %29 = arith.select %26, %24, %28 : vector<64x256xi1>, vector<64x256xf32>
    %30 = vector.shape_cast %29 : vector<64x256xf32> to vector<8x8x256xf32>
    %cst_17 = arith.constant dense<0.000000e+00> : vector<8x256xf32>
    %31 = vector.multi_reduction <add>, %30, %cst_17 [1] : vector<8x8x256xf32> to vector<8x256xf32>
    %cst_18 = arith.constant 8.000000e+00 : f32
    %32 = vector.broadcast %cst_18 : f32 to vector<8x256xf32>
    %33 = arith.divf %31, %32 : vector<8x256xf32>
    %34 = arith.truncf %33 : vector<8x256xf32> to vector<8x256xbf16>
    %c0_19 = arith.constant 0 : index
    %c0_20 = arith.constant 0 : index
    %35 = vector.load %arg5[%c0_19, %c0_20] : memref<256x256xbf16, #tpu.memory_space<vmem>>, vector<256x256xbf16>
    %cst_21 = arith.constant dense<0.000000e+00> : vector<8x256xf32>
    %36 = tpu.matmul %34, %35, %cst_21 {dimension_numbers = #tpu.dot_dimension_numbers<[1], [0], [0], [1], [0, 0, 1, 1], [], []>} : vector<8x256xbf16>, vector<256x256xbf16>, vector<8x256xf32> -> vector<8x256xf32>
    %c0_22 = arith.constant 0 : index
    %c0_23 = arith.constant 0 : index
    %37 = vector.load %arg6[%c0_22, %c0_23] : memref<1x256xf32, #tpu.memory_space<vmem>>, vector<1x256xf32>
    %38 = vector.broadcast %37 : vector<1x256xf32> to vector<8x256xf32>
    %39 = arith.addf %36, %38 : vector<8x256xf32>
    %cst_24 = arith.constant 0.000000e+00 : f32
    %40 = vector.broadcast %cst_24 : f32 to vector<8x256xf32>
    %41 = arith.cmpf oge, %39, %40 : vector<8x256xf32>
    %42 = vector.broadcast %0 : vector<1x256xf32> to vector<8x256xf32>
    %43 = arith.mulf %39, %42 : vector<8x256xf32>
    %44 = arith.select %41, %39, %43 : vector<8x256xi1>, vector<8x256xf32>
    %45 = arith.truncf %44 : vector<8x256xf32> to vector<8x256xbf16>
    %c0_25 = arith.constant 0 : index
    %c0_26 = arith.constant 0 : index
    %46 = vector.load %arg7[%c0_25, %c0_26] : memref<256x256xbf16, #tpu.memory_space<vmem>>, vector<256x256xbf16>
    %cst_27 = arith.constant dense<0.000000e+00> : vector<8x256xf32>
    %47 = tpu.matmul %45, %46, %cst_27 {dimension_numbers = #tpu.dot_dimension_numbers<[1], [0], [0], [1], [0, 0, 1, 1], [], []>} : vector<8x256xbf16>, vector<256x256xbf16>, vector<8x256xf32> -> vector<8x256xf32>
    %c0_28 = arith.constant 0 : index
    %c0_29 = arith.constant 0 : index
    %48 = vector.load %arg8[%c0_28, %c0_29] : memref<1x256xf32, #tpu.memory_space<vmem>>, vector<1x256xf32>
    %49 = vector.broadcast %48 : vector<1x256xf32> to vector<8x256xf32>
    %50 = arith.addf %47, %49 : vector<8x256xf32>
    %cst_30 = arith.constant 0.000000e+00 : f32
    %51 = vector.broadcast %cst_30 : f32 to vector<8x256xf32>
    %52 = arith.cmpf oge, %50, %51 : vector<8x256xf32>
    %53 = vector.broadcast %0 : vector<1x256xf32> to vector<8x256xf32>
    %54 = arith.mulf %50, %53 : vector<8x256xf32>
    %55 = arith.select %52, %50, %54 : vector<8x256xi1>, vector<8x256xf32>
    %c0_31 = arith.constant 0 : index
    %c0_32 = arith.constant 0 : index
    %56 = vector.load %arg9[%c0_31, %c0_32] : memref<1x256xf32, #tpu.memory_space<vmem>>, vector<1x256xf32>
    %57 = vector.broadcast %56 : vector<1x256xf32> to vector<8x256xf32>
    %58 = arith.mulf %55, %57 : vector<8x256xf32>
    %cst_33 = arith.constant dense<0.000000e+00> : vector<8xf32>
    %59 = vector.multi_reduction <add>, %58, %cst_33 [1] : vector<8x256xf32> to vector<8xf32>
    %60 = vector.shape_cast %59 : vector<8xf32> to vector<8x1xf32>
    %c0_34 = arith.constant 0 : index
    %c0_35 = arith.constant 0 : index
    %61 = vector.load %arg10[%c0_34, %c0_35] : memref<1x1xf32, #tpu.memory_space<vmem>>, vector<1x1xf32>
    %62 = vector.broadcast %61 : vector<1x1xf32> to vector<8x1xf32>
    %63 = arith.addf %60, %62 : vector<8x1xf32>
    %c0_36 = arith.constant 0 : index
    %c0_37 = arith.constant 0 : index
    %64 = vector.load %arg11[%c0_36, %c0_37] : memref<8x1xf32, #tpu.memory_space<vmem>>, vector<8x1xf32>
    tpu.vector_store %arg11[%c0_36, %c0_37], %63 {strides = array<i32>} : memref<8x1xf32, #tpu.memory_space<vmem>>, vector<8x1xf32>,
    return
  }
  func.func @transform_0(%arg0: i32) -> (i32, i32, i32) {
    %c0_i32 = arith.constant 0 : i32
    %c0_i32_0 = arith.constant 0 : i32
    %c0_i32_1 = arith.constant 0 : i32
    return %arg0, %c0_i32, %c0_i32_0 : i32, i32, i32
  }
  func.func @transform_1(%arg0: i32) -> (i32, i32, i32) {
    %c0_i32 = arith.constant 0 : i32
    %c0_i32_0 = arith.constant 0 : i32
    %c0_i32_1 = arith.constant 0 : i32
    %c0_i32_2 = arith.constant 0 : i32
    return %c0_i32, %c0_i32_0, %c0_i32_1 : i32, i32, i32
  }
  func.func @transform_2(%arg0: i32) -> (i32, i32) {
    %c0_i32 = arith.constant 0 : i32
    %c0_i32_0 = arith.constant 0 : i32
    %c0_i32_1 = arith.constant 0 : i32
    return %c0_i32, %c0_i32_0 : i32, i32
  }
  func.func @transform_3(%arg0: i32) -> (i32, i32) {
    %c0_i32 = arith.constant 0 : i32
    %c0_i32_0 = arith.constant 0 : i32
    %c0_i32_1 = arith.constant 0 : i32
    return %c0_i32, %c0_i32_0 : i32, i32
  }
  func.func @transform_4(%arg0: i32) -> (i32, i32) {
    %c0_i32 = arith.constant 0 : i32
    %c0_i32_0 = arith.constant 0 : i32
    %c0_i32_1 = arith.constant 0 : i32
    return %c0_i32, %c0_i32_0 : i32, i32
  }
  func.func @transform_5(%arg0: i32) -> (i32, i32) {
    %c0_i32 = arith.constant 0 : i32
    %c0_i32_0 = arith.constant 0 : i32
    %c0_i32_1 = arith.constant 0 : i32
    return %c0_i32, %c0_i32_0 : i32, i32
  }
  func.func @transform_6(%arg0: i32) -> (i32, i32) {
    %c0_i32 = arith.constant 0 : i32
    %c0_i32_0 = arith.constant 0 : i32
    %c0_i32_1 = arith.constant 0 : i32
    return %c0_i32, %c0_i32_0 : i32, i32
  }
  func.func @transform_7(%arg0: i32) -> (i32, i32) {
    %c0_i32 = arith.constant 0 : i32
    %c0_i32_0 = arith.constant 0 : i32
    %c0_i32_1 = arith.constant 0 : i32
    return %c0_i32, %c0_i32_0 : i32, i32
  }
  func.func @transform_8(%arg0: i32) -> (i32, i32) {
    %c0_i32 = arith.constant 0 : i32
    %c0_i32_0 = arith.constant 0 : i32
    %c0_i32_1 = arith.constant 0 : i32
    return %c0_i32, %c0_i32_0 : i32, i32
  }
  func.func @transform_9(%arg0: i32) -> (i32, i32) {
    %c0_i32 = arith.constant 0 : i32
    %c0_i32_0 = arith.constant 0 : i32
    %c0_i32_1 = arith.constant 0 : i32
    return %c0_i32, %c0_i32_0 : i32, i32
  }
  func.func @transform_10(%arg0: i32) -> (i32, i32) {
    %c0_i32 = arith.constant 0 : i32
    %c0_i32_0 = arith.constant 0 : i32
    return %arg0, %c0_i32 : i32, i32
  }
}

</mosaic_0001>

<llo_original>
// kernel: tpu_custom_call.1
$region0: #{tpu_custom_call.1}
  #allocation0 [shape = 'u32[]', space=smem, size = 0x4, offset = 0x4, fixed_abs, tag = 'smem constant byte address 0x4 - core index']
  #allocation1 [shape = 'u32[144,128]{1,0:T(1,128)}', space=vmem, size = 0x12000, scoped, tag = 'internal scratch']
  #allocation2 [shape = 'f32[1,1]{1,0:T(1,128)S(1)}', space=vmem, size = 0x200, scoped, tag = 'scoped memory for tpu_custom_call.1']
  %s0 = inlined_call_operand.vmem [shape: f32[8,10,3], index: 0, kind: input, shape index: {}]
  %s1 = inlined_call_operand.vmem [shape: bf16[3,3,256], index: 1, kind: input, shape index: {}]
  %s2 = inlined_call_operand.vmem [shape: f32[1,256], index: 2, kind: input, shape index: {}]
  %s3 = inlined_call_operand.vmem [shape: f32[1,256], index: 3, kind: input, shape index: {}]
  %s4 = inlined_call_operand.hbm [shape: bf16[256,256], index: 4, kind: input, shape index: {}]
  %s5 = inlined_call_operand.vmem [shape: f32[1,256], index: 5, kind: input, shape index: {}]
  %s6 = inlined_call_operand.hbm [shape: bf16[256,256], index: 6, kind: input, shape index: {}]
  %s7 = inlined_call_operand.vmem [shape: f32[1,256], index: 7, kind: input, shape index: {}]
  %s8 = inlined_call_operand.vmem [shape: f32[1,256], index: 8, kind: input, shape index: {}]
  %s9 = inlined_call_operand.<no memory space> [shape: f32[1,1], index: 9, kind: input, shape index: {}]
  %s10 = inlined_call_operand.vmem [shape: f32[8,1], index: 10, kind: output, shape index: {}]
  %s11 = sld [smem:[#allocation0]]
  $region58: #{tpu_custom_call.1} parent=0
    _
  %s13 = ssub.s32 1, %s11
  %s14 = scalar_select 0, %s13, %s11
  %v15 = vstv %s9
  %16 = vst [vmem:[#allocation2] sm:$0x1] %v15
  $region1: #{tpu_custom_call.1} parent=0
    #allocation3 [shape = 'u8[131072]{0}', space=vmem, size = 0x20000, scoped, tag = 'input window, operand 4, single buffered']
    #allocation4 [shape = 's32[1]{0}', space=sflag, size = 0x4, scoped, tag = 'scoped memory for tpu_custom_call.1']
    #allocation5 [shape = 'u8[131072]{0}', space=vmem, size = 0x20000, scoped, tag = 'input window, operand 6, single buffered']
    #allocation6 [shape = 's32[1]{0}', space=sflag, size = 0x4, scoped, tag = 'scoped memory for tpu_custom_call.1']
    %17 = vsyncpa [#allocation4], 0
    %18 = vsyncpa [#allocation6], 0
    // Predicated region
    $region2: #{tpu_custom_call.1} parent=1 // pred_check
      _
    $region3: #{tpu_custom_call.1} parent=1 // pred_check_branch
      %20 = sbr.rel (0) target = $region5
    $region4: #{tpu_custom_call.1} parent=1 // pred_region
      _
    $region5: #{tpu_custom_call.1} parent=1 // pred_fallthru
      _
    // Predicated region
    $region6: #{tpu_custom_call.1} parent=1 // pred_check
      _
    $region7: #{tpu_custom_call.1} parent=1 // pred_check_branch
      %22 = sbr.rel (0) target = $region9
    $region8: #{tpu_custom_call.1} parent=1 // pred_region
      _
    $region9: #{tpu_custom_call.1} parent=1 // pred_fallthru
      _
    // Predicated region
    $region10: #{tpu_custom_call.1} parent=1 // pred_check
      _
    $region11: #{tpu_custom_call.1} parent=1 // pred_check_branch
      %24 = sbr.rel (0) target = $region13
    $region12: #{tpu_custom_call.1} parent=1 // pred_region
      _
    $region13: #{tpu_custom_call.1} parent=1 // pred_fallthru
      _
    // Predicated region
    $region14: #{tpu_custom_call.1} parent=1 // pred_check
      _
    $region15: #{tpu_custom_call.1} parent=1 // pred_check_branch
      %26 = sbr.rel (0) target = $region17
    $region16: #{tpu_custom_call.1} parent=1 // pred_region
      _
    $region17: #{tpu_custom_call.1} parent=1 // pred_fallthru
      _
    // Predicated region
    $region18: #{tpu_custom_call.1} parent=1 // pred_check
      _
    $region19: #{tpu_custom_call.1} parent=1 // pred_check_branch
      %28 = sbr.rel (0) target = $region21
    $region20: #{tpu_custom_call.1} parent=1 // pred_region
      %s30 = ssub.s32 4096, 4096
      %31 = vsyncadd [#allocation4], %s30
      %s32 = sshll.u32 [#allocation3], 4
      %s33 = int_to_ptr.vmem [resolvable:$true] %s32
      %38 = dma.hbm_to_vmem [thread:$0]  %s4, 4096, %s33, [#allocation4], 128, 128, 8
    $region21: #{tpu_custom_call.1} parent=1 // pred_fallthru
      _
    // Predicated region
    $region22: #{tpu_custom_call.1} parent=1 // pred_check
      _
    $region23: #{tpu_custom_call.1} parent=1 // pred_check_branch
      %40 = sbr.rel (0) target = $region25
    $region24: #{tpu_custom_call.1} parent=1 // pred_region
      _
    $region25: #{tpu_custom_call.1} parent=1 // pred_fallthru
      _
    // Predicated region
    $region26: #{tpu_custom_call.1} parent=1 // pred_check
      _
    $region27: #{tpu_custom_call.1} parent=1 // pred_check_branch
      %42 = sbr.rel (0) target = $region29
    $region28: #{tpu_custom_call.1} parent=1 // pred_region
      %s44 = ssub.s32 4096, 4096
      %45 = vsyncadd [#allocation6], %s44
      %s46 = sshll.u32 [#allocation5], 4
      %s47 = int_to_ptr.vmem [resolvable:$true] %s46
      %52 = dma.hbm_to_vmem [thread:$0]  %s6, 4096, %s47, [#allocation6], 128, 128, 8
    $region29: #{tpu_custom_call.1} parent=1 // pred_fallthru
      _
    // Predicated region
    $region30: #{tpu_custom_call.1} parent=1 // pred_check
      _
    $region31: #{tpu_custom_call.1} parent=1 // pred_check_branch
      %54 = sbr.rel (0) target = $region33
    $region32: #{tpu_custom_call.1} parent=1 // pred_region
      _
    $region33: #{tpu_custom_call.1} parent=1 // pred_fallthru
      _
    // Predicated region
    $region34: #{tpu_custom_call.1} parent=1 // pred_check
      _
    $region35: #{tpu_custom_call.1} parent=1 // pred_check_branch
      %56 = sbr.rel (0) target = $region37
    $region36: #{tpu_custom_call.1} parent=1 // pred_region
      _
    $region37: #{tpu_custom_call.1} parent=1 // pred_fallthru
      _
    // Predicated region
    $region38: #{tpu_custom_call.1} parent=1 // pred_check
      _
    $region39: #{tpu_custom_call.1} parent=1 // pred_check_branch
      %58 = sbr.rel (0) target = $region41
    $region40: #{tpu_custom_call.1} parent=1 // pred_region
      _
    $region41: #{tpu_custom_call.1} parent=1 // pred_fallthru
      _
    // Predicated region
    $region42: #{tpu_custom_call.1} parent=1 // pred_check
      _
    $region43: #{tpu_custom_call.1} parent=1 // pred_check_branch
      %60 = sbr.rel (0) target = $region45
    $region44: #{tpu_custom_call.1} parent=1 // pred_region
      %61 = dma.done [#allocation4], 4096
    $region45: #{tpu_custom_call.1} parent=1 // pred_fallthru
      _
    // Predicated region
    $region46: #{tpu_custom_call.1} parent=1 // pred_check
      _
    $region47: #{tpu_custom_call.1} parent=1 // pred_check_branch
      %63 = sbr.rel (0) target = $region49
    $region48: #{tpu_custom_call.1} parent=1 // pred_region
      %64 = dma.done [#allocation6], 4096
    $region49: #{tpu_custom_call.1} parent=1 // pred_fallthru
      _
    %v66 = vld [vmem:[%s3] sm:$0x3]
    %v67 = vld [vmem:[%s0] sm:$0xff]
    %v68 = vld [vmem:[%s0 + $0x8] sm:$0x3]
    %v69 = vld [vmem:[%s0 + $0x10] sm:$0xff]
    %v70 = vld [vmem:[%s0 + $0x18] sm:$0x3]
    %v71 = vld [vmem:[%s0 + $0x20] sm:$0xff]
    %v72 = vld [vmem:[%s0 + $0x28] sm:$0x3]
    %v73 = vld [vmem:[%s0 + $0x30] sm:$0xff]
    %v74 = vld [vmem:[%s0 + $0x38] sm:$0x3]
    %v75 = vld [vmem:[%s0 + $0x40] sm:$0xff]
    %v76 = vld [vmem:[%s0 + $0x48] sm:$0x3]
    %v77 = vld [vmem:[%s0 + $0x50] sm:$0xff]
    %v78 = vld [vmem:[%s0 + $0x58] sm:$0x3]
    %v79 = vld [vmem:[%s0 + $0x60] sm:$0xff]
    %v80 = vld [vmem:[%s0 + $0x68] sm:$0x3]
    %v81 = vld [vmem:[%s0 + $0x70] sm:$0xff]
    %v82 = vld [vmem:[%s0 + $0x78] sm:$0x3]
    %v83 = vpack.c.bf16 %v68, %v67
    %v84 = vpack.c.bf16 %v70, %v69
    %v85 = vpack.c.bf16 %v72, %v71
    %v86 = vpack.c.bf16 %v74, %v73
    %v87 = vpack.c.bf16 %v76, %v75
    %v88 = vpack.c.bf16 %v78, %v77
    %v89 = vpack.c.bf16 %v80, %v79
    %v90 = vpack.c.bf16 %v82, %v81
    %v91 = vld [vmem:[%s1] sm:$0xf]
    %v100 = vunpack.c.l.b16 %v83
    %v101 = vunpack.c.h.b16 %v83
    %v102 = vunpack.c.l.b16 %v84
    %v103 = vunpack.c.h.b16 %v84
    %v104 = vunpack.c.l.b16 %v85
    %v105 = vunpack.c.h.b16 %v85
    %v106 = vunpack.c.l.b16 %v86
    %v107 = vunpack.c.h.b16 %v86
    %v108 = vunpack.c.l.b16 %v87
    %v109 = vunpack.c.h.b16 %v87
    %v110 = vunpack.c.l.b16 %v88
    %v111 = vunpack.c.h.b16 %v88
    %v112 = vunpack.c.l.b16 %v89
    %v113 = vunpack.c.h.b16 %v89
    %v114 = vunpack.c.l.b16 %v90
    %v115 = vunpack.c.h.b16 %v90
    %v116 = vpack.c.b16 %v100, %v100
    %v117 = vpack.c.b16 %v101, %v101
    %v118 = vpack.c.b16 %v102, %v102
    %v119 = vpack.c.b16 %v103, %v103
    %v120 = vpack.c.b16 %v104, %v104
    %v121 = vpack.c.b16 %v105, %v105
    %v122 = vpack.c.b16 %v106, %v106
    %v123 = vpack.c.b16 %v107, %v107
    %v124 = vpack.c.b16 %v108, %v108
    %v125 = vpack.c.b16 %v109, %v109
    %v126 = vpack.c.b16 %v110, %v110
    %v127 = vpack.c.b16 %v111, %v111
    %v128 = vpack.c.b16 %v112, %v112
    %v129 = vpack.c.b16 %v113, %v113
    %v130 = vpack.c.b16 %v114, %v114
    %v131 = vpack.c.b16 %v115, %v115
    %vm132 = vsmask.f32 3328
    %vm133 = vsmask.f32 7440
    %vm134 = vmor %vm132, %vm133
    %v136 = vshrl.u32 %v116, 16
    %v138 = vrot.slane %v136, 4
    %v139 = vshll.u32 %v116, 16
    %v141 = vrot.slane %v139, 5
    %v142 = vor.u32 %v138, %v141
    %v143 = vrot.slane %v142, 4
    %v145 = vshll.u32 %v117, 16
    %v147 = vrot.slane %v145, 5
    %v148 = vsel %vm134, %v143, %v147
    %v150 = vshrl.u32 %v118, 16
    %v152 = vrot.slane %v150, 4
    %v153 = vshll.u32 %v118, 16
    %v155 = vrot.slane %v153, 5
    %v156 = vor.u32 %v152, %v155
    %v157 = vrot.slane %v156, 4
    %v159 = vshll.u32 %v119, 16
    %v161 = vrot.slane %v159, 5
    %v162 = vsel %vm134, %v157, %v161
    %v164 = vshrl.u32 %v120, 16
    %v166 = vrot.slane %v164, 4
    %v167 = vshll.u32 %v120, 16
    %v169 = vrot.slane %v167, 5
    %v170 = vor.u32 %v166, %v169
    %v171 = vrot.slane %v170, 4
    %v173 = vshll.u32 %v121, 16
    %v175 = vrot.slane %v173, 5
    %v176 = vsel %vm134, %v171, %v175
    %v178 = vshrl.u32 %v122, 16
    %v180 = vrot.slane %v178, 4
    %v181 = vshll.u32 %v122, 16
    %v183 = vrot.slane %v181, 5
    %v184 = vor.u32 %v180, %v183
    %v185 = vrot.slane %v184, 4
    %v187 = vshll.u32 %v123, 16
    %v189 = vrot.slane %v187, 5
    %v190 = vsel %vm134, %v185, %v189
    %v192 = vshrl.u32 %v124, 16
    %v194 = vrot.slane %v192, 4
    %v195 = vshll.u32 %v124, 16
    %v197 = vrot.slane %v195, 5
    %v198 = vor.u32 %v194, %v197
    %v199 = vrot.slane %v198, 4
    %v201 = vshll.u32 %v125, 16
    %v203 = vrot.slane %v201, 5
    %v204 = vsel %vm134, %v199, %v203
    %v206 = vshrl.u32 %v126, 16
    %v208 = vrot.slane %v206, 4
    %v209 = vshll.u32 %v126, 16
    %v211 = vrot.slane %v209, 5
    %v212 = vor.u32 %v208, %v211
    %v213 = vrot.slane %v212, 4
    %v215 = vshll.u32 %v127, 16
    %v217 = vrot.slane %v215, 5
    %v218 = vsel %vm134, %v213, %v217
    %v220 = vshrl.u32 %v128, 16
    %v222 = vrot.slane %v220, 4
    %v223 = vshll.u32 %v128, 16
    %v225 = vrot.slane %v223, 5
    %v226 = vor.u32 %v222, %v225
    %v227 = vrot.slane %v226, 4
    %v229 = vshll.u32 %v129, 16
    %v231 = vrot.slane %v229, 5
    %v232 = vsel %vm134, %v227, %v231
    %v234 = vshrl.u32 %v130, 16
    %v236 = vrot.slane %v234, 4
    %v237 = vshll.u32 %v130, 16
    %v239 = vrot.slane %v237, 5
    %v240 = vor.u32 %v236, %v239
    %v241 = vrot.slane %v240, 4
    %v243 = vshll.u32 %v131, 16
    %v245 = vrot.slane %v243, 5
    %v246 = vsel %vm134, %v241, %v245
    %s247 = scalar_lea.vmem %s1, 4
    %v248 = vld [vmem:[%s247] sm:$0xf]
    %v249 = vunpack.c.l.b16 %v148
    %v250 = vunpack.c.l.b16 %v162
    %v251 = vunpack.c.l.b16 %v176
    %v252 = vunpack.c.l.b16 %v190
    %v253 = vunpack.c.l.b16 %v204
    %v254 = vunpack.c.l.b16 %v218
    %v255 = vunpack.c.l.b16 %v232
    %v256 = vunpack.c.l.b16 %v246
    %v257 = vpack.c.b16 %v250, %v249
    %v258 = vpack.c.b16 %v252, %v251
    %v259 = vpack.c.b16 %v254, %v253
    %v260 = vpack.c.b16 %v256, %v255
    %v263 = vunpack.c.l.s4 1983009808
    %v264 = vunpack.c.0.s8 %v263
    %v265 = vlaneseq
    %v266 = vshrl.u32 %v265, 7
    %v267 = vsub.s32 %v264, %v266
    %v268 = vrot.slane %v248, %v267
    %v269 = vcombine.high %v268, %v268
    %vm270 = vcmask 23552
    %v272 = vsel %vm270, %v257, 0
    %v275 = vsel %vm270, %v258, 0
    %v278 = vsel %vm270, %v259, 0
    %v281 = vsel %vm270, %v260, 0
    %vm283 = vcmask 1040384
    %vm284 = vcmask 1041408
    %v285 = vsel %vm283, 4294967295, 65535
    %v286 = vsel %vm284, %v285, 0
    %v288 = vand.u32 %v268, %v286
    %v291 = vand.u32 %v269, %v286
    %293 = vmatprep.subr.bf16.mxu0 0
    %294 = vmatpush1.bf16.msra.mxu0 0
    %295 = vmatprep.subr.bf16.mxu0 0
    %296 = vmatpush1.bf16.msra.mxu0 0
    %297 = vmatprep.subr.bf16.mxu0 0
    %298 = vmatpush1.bf16.msra.mxu0 0
    %299 = vmatprep.subr.bf16.mxu0 0
    %300 = vmatpush1.bf16.msra.mxu0 0
    %301 = vmatprep.subr.bf16.mxu0 0
    %302 = vmatpush1.bf16.msra.mxu0 0
    %303 = vmatprep.subr.bf16.mxu0 0
    %304 = vmatpush1.bf16.msra.mxu0 0
    %305 = vmatprep.subr.bf16.mxu0 0
    %306 = vmatpush1.bf16.msra.mxu0 0
    %307 = vmatprep.subr.bf16.mxu0 %v291
    %308 = vmatpush1.bf16.msra.mxu0 %v288
    %309 = vmatprep.subr.bf16.mxu0 0
    %310 = vmatpush2.bf16.msra.mxu0 0
    %311 = vmatprep.subr.bf16.mxu0 0
    %312 = vmatpush2.bf16.msra.mxu0 0
    %313 = vmatprep.subr.bf16.mxu0 0
    %314 = vmatpush2.bf16.msra.mxu0 0
    %315 = vmatprep.subr.bf16.mxu0 0
    %316 = vmatpush2.bf16.msra.mxu0 0
    %317 = vmatprep.subr.bf16.mxu0 0
    %318 = vmatpush2.bf16.msra.mxu0 0
    %319 = vmatprep.subr.bf16.mxu0 0
    %320 = vmatpush2.bf16.msra.mxu0 0
    %321 = vmatprep.subr.bf16.mxu0 0
    %322 = vmatpush2.bf16.msra.mxu0 0
    %323 = vmatprep.subr.bf16.mxu0 0
    %324 = vmatpush2.bf16.msra.mxu0 0
    %325 = vmatprep.mubr.bf16.mxu0 0
    %326 = vmatmul.mubr.bf16.gmra.mxu0 %v272
    %v327 = vpop.f32.mrf.mxu0
    %v328 = vadd.f32 0.0, %v327
    %v329 = vpop.f32.mrf.mxu0
    %v330 = vadd.f32 0.0, %v329
    %v331 = vpop.f32.mrf.mxu0
    %v332 = vadd.f32 0.0, %v331
    %v333 = vpop.f32.mrf.mxu0
    %v334 = vadd.f32 0.0, %v333
    %335 = vmatprep.mubr.bf16.mxu0 0
    %336 = vmatmul.mubr.bf16.gmra.mxu0 %v275
    %v337 = vpop.f32.mrf.mxu0
    %v338 = vadd.f32 0.0, %v337
    %v339 = vpop.f32.mrf.mxu0
    %v340 = vadd.f32 0.0, %v339
    %v341 = vpop.f32.mrf.mxu0
    %v342 = vadd.f32 0.0, %v341
    %v343 = vpop.f32.mrf.mxu0
    %v344 = vadd.f32 0.0, %v343
    %345 = vmatprep.mubr.bf16.mxu0 0
    %346 = vmatmul.mubr.bf16.gmra.mxu0 %v278
    %v347 = vpop.f32.mrf.mxu0
    %v348 = vadd.f32 0.0, %v347
    %v349 = vpop.f32.mrf.mxu0
    %v350 = vadd.f32 0.0, %v349
    %v351 = vpop.f32.mrf.mxu0
    %v352 = vadd.f32 0.0, %v351
    %v353 = vpop.f32.mrf.mxu0
    %v354 = vadd.f32 0.0, %v353
    %355 = vmatprep.mubr.bf16.mxu0 0
    %356 = vmatmul.mubr.bf16.gmra.mxu0 %v281
    %v357 = vpop.f32.mrf.mxu0
    %v358 = vadd.f32 0.0, %v357
    %v359 = vpop.f32.mrf.mxu0
    %v360 = vadd.f32 0.0, %v359
    %v361 = vpop.f32.mrf.mxu0
    %v362 = vadd.f32 0.0, %v361
    %v363 = vpop.f32.mrf.mxu0
    %v364 = vadd.f32 0.0, %v363
    %365 = vdwg.mxu0
    %v366 = vpack.c.b16 %v102, %v100
    %v367 = vpack.c.b16 %v106, %v104
    %v368 = vpack.c.b16 %v110, %v108
    %v369 = vpack.c.b16 %v114, %v112
    %v372 = vunpack.c.l.s4 1983009808
    %v373 = vunpack.c.0.s8 %v372
    %v374 = vlaneseq
    %v375 = vshrl.u32 %v374, 7
    %v376 = vsub.s32 %v373, %v375
    %v377 = vrot.slane %v91, %v376
    %v378 = vcombine.high %v377, %v377
    %v380 = vsel %vm270, %v366, 0
    %v383 = vsel %vm270, %v367, 0
    %v386 = vsel %vm270, %v368, 0
    %v389 = vsel %vm270, %v369, 0
    %v392 = vand.u32 %v377, %v286
    %v395 = vand.u32 %v378, %v286
    %397 = vmatprep.subr.bf16.mxu0 0
    %398 = vmatpush1.bf16.msra.mxu0 0
    %399 = vmatprep.subr.bf16.mxu0 0
    %400 = vmatpush1.bf16.msra.mxu0 0
    %401 = vmatprep.subr.bf16.mxu0 0
    %402 = vmatpush1.bf16.msra.mxu0 0
    %403 = vmatprep.subr.bf16.mxu0 0
    %404 = vmatpush1.bf16.msra.mxu0 0
    %405 = vmatprep.subr.bf16.mxu0 0
    %406 = vmatpush1.bf16.msra.mxu0 0
    %407 = vmatprep.subr.bf16.mxu0 0
    %408 = vmatpush1.bf16.msra.mxu0 0
    %409 = vmatprep.subr.bf16.mxu0 0
    %410 = vmatpush1.bf16.msra.mxu0 0
    %411 = vmatprep.subr.bf16.mxu0 %v395
    %412 = vmatpush1.bf16.msra.mxu0 %v392
    %413 = vmatprep.subr.bf16.mxu0 0
    %414 = vmatpush2.bf16.msra.mxu0 0
    %415 = vmatprep.subr.bf16.mxu0 0
    %416 = vmatpush2.bf16.msra.mxu0 0
    %417 = vmatprep.subr.bf16.mxu0 0
    %418 = vmatpush2.bf16.msra.mxu0 0
    %419 = vmatprep.subr.bf16.mxu0 0
    %420 = vmatpush2.bf16.msra.mxu0 0
    %421 = vmatprep.subr.bf16.mxu0 0
    %422 = vmatpush2.bf16.msra.mxu0 0
    %423 = vmatprep.subr.bf16.mxu0 0
    %424 = vmatpush2.bf16.msra.mxu0 0
    %425 = vmatprep.subr.bf16.mxu0 0
    %426 = vmatpush2.bf16.msra.mxu0 0
    %427 = vmatprep.subr.bf16.mxu0 0
    %428 = vmatpush2.bf16.msra.mxu0 0
    %429 = vmatprep.mubr.bf16.mxu0 0
    %430 = vmatmul.mubr.bf16.gmra.mxu0 %v380
    %v431 = vpop.f32.mrf.mxu0
    %v432 = vadd.f32 %v328, %v431
    %v433 = vpop.f32.mrf.mxu0
    %v434 = vadd.f32 %v330, %v433
    %v435 = vpop.f32.mrf.mxu0
    %v436 = vadd.f32 %v332, %v435
    %v437 = vpop.f32.mrf.mxu0
    %v438 = vadd.f32 %v334, %v437
    %439 = vmatprep.mubr.bf16.mxu0 0
    %440 = vmatmul.mubr.bf16.gmra.mxu0 %v383
    %v441 = vpop.f32.mrf.mxu0
    %v442 = vadd.f32 %v338, %v441
    %v443 = vpop.f32.mrf.mxu0
    %v444 = vadd.f32 %v340, %v443
    %v445 = vpop.f32.mrf.mxu0
    %v446 = vadd.f32 %v342, %v445
    %v447 = vpop.f32.mrf.mxu0
    %v448 = vadd.f32 %v344, %v447
    %449 = vmatprep.mubr.bf16.mxu0 0
    %450 = vmatmul.mubr.bf16.gmra.mxu0 %v386
    %v451 = vpop.f32.mrf.mxu0
    %v452 = vadd.f32 %v348, %v451
    %v453 = vpop.f32.mrf.mxu0
    %v454 = vadd.f32 %v350, %v453
    %v455 = vpop.f32.mrf.mxu0
    %v456 = vadd.f32 %v352, %v455
    %v457 = vpop.f32.mrf.mxu0
    %v458 = vadd.f32 %v354, %v457
    %459 = vmatprep.mubr.bf16.mxu0 0
    %460 = vmatmul.mubr.bf16.gmra.mxu0 %v389
    %v461 = vpop.f32.mrf.mxu0
    %v462 = vadd.f32 %v358, %v461
    %v463 = vpop.f32.mrf.mxu0
    %v464 = vadd.f32 %v360, %v463
    %v465 = vpop.f32.mrf.mxu0
    %v466 = vadd.f32 %v362, %v465
    %v467 = vpop.f32.mrf.mxu0
    %v468 = vadd.f32 %v364, %v467
    %469 = vdwg.mxu0
    %vm470 = vcmask 1042432
    %vm471 = vcmask 1046532
    %vm472 = vmor %vm470, %vm471
    %v473 = vrot.slane %v116, 5
    %v474 = vrot.slane %v473, 4
    %v475 = vrot.slane %v117, 5
    %v476 = vsel %vm472, %v474, %v475
    %v477 = vrot.slane %v118, 5
    %v478 = vrot.slane %v477, 4
    %v479 = vrot.slane %v119, 5
    %v480 = vsel %vm472, %v478, %v479
    %v481 = vrot.slane %v120, 5
    %v482 = vrot.slane %v481, 4
    %v483 = vrot.slane %v121, 5
    %v484 = vsel %vm472, %v482, %v483
    %v485 = vrot.slane %v122, 5
    %v486 = vrot.slane %v485, 4
    %v487 = vrot.slane %v123, 5
    %v488 = vsel %vm472, %v486, %v487
    %v489 = vrot.slane %v124, 5
    %v490 = vrot.slane %v489, 4
    %v491 = vrot.slane %v125, 5
    %v492 = vsel %vm472, %v490, %v491
    %v493 = vrot.slane %v126, 5
    %v494 = vrot.slane %v493, 4
    %v495 = vrot.slane %v127, 5
    %v496 = vsel %vm472, %v494, %v495
    %v497 = vrot.slane %v128, 5
    %v498 = vrot.slane %v497, 4
    %v499 = vrot.slane %v129, 5
    %v500 = vsel %vm472, %v498, %v499
    %v501 = vrot.slane %v130, 5
    %v502 = vrot.slane %v501, 4
    %v503 = vrot.slane %v131, 5
    %v504 = vsel %vm472, %v502, %v503
    %s505 = scalar_lea.vmem %s1, 8
    %v506 = vld [vmem:[%s505] sm:$0xf]
    %v507 = vunpack.c.l.b16 %v476
    %v508 = vunpack.c.l.b16 %v480
    %v509 = vunpack.c.l.b16 %v484
    %v510 = vunpack.c.l.b16 %v488
    %v511 = vunpack.c.l.b16 %v492
    %v512 = vunpack.c.l.b16 %v496
    %v513 = vunpack.c.l.b16 %v500
    %v514 = vunpack.c.l.b16 %v504
    %v515 = vpack.c.b16 %v508, %v507
    %v516 = vpack.c.b16 %v510, %v509
    %v517 = vpack.c.b16 %v512, %v511
    %v518 = vpack.c.b16 %v514, %v513
    %v521 = vunpack.c.l.s4 1983009808
    %v522 = vunpack.c.0.s8 %v521
    %v523 = vlaneseq
    %v524 = vshrl.u32 %v523, 7
    %v525 = vsub.s32 %v522, %v524
    %v526 = vrot.slane %v506, %v525
    %v527 = vcombine.high %v526, %v526
    %v529 = vsel %vm270, %v515, 0
    %v532 = vsel %vm270, %v516, 0
    %v535 = vsel %vm270, %v517, 0
    %v538 = vsel %vm270, %v518, 0
    %v541 = vand.u32 %v526, %v286
    %v544 = vand.u32 %v527, %v286
    %546 = vmatprep.subr.bf16.mxu0 0
    %547 = vmatpush1.bf16.msra.mxu0 0
    %548 = vmatprep.subr.bf16.mxu0 0
    %549 = vmatpush1.bf16.msra.mxu0 0
    %550 = vmatprep.subr.bf16.mxu0 0
    %551 = vmatpush1.bf16.msra.mxu0 0
    %552 = vmatprep.subr.bf16.mxu0 0
    %553 = vmatpush1.bf16.msra.mxu0 0
    %554 = vmatprep.subr.bf16.mxu0 0
    %555 = vmatpush1.bf16.msra.mxu0 0
    %556 = vmatprep.subr.bf16.mxu0 0
    %557 = vmatpush1.bf16.msra.mxu0 0
    %558 = vmatprep.subr.bf16.mxu0 0
    %559 = vmatpush1.bf16.msra.mxu0 0
    %560 = vmatprep.subr.bf16.mxu0 %v544
    %561 = vmatpush1.bf16.msra.mxu0 %v541
    %562 = vmatprep.subr.bf16.mxu0 0
    %563 = vmatpush2.bf16.msra.mxu0 0
    %564 = vmatprep.subr.bf16.mxu0 0
    %565 = vmatpush2.bf16.msra.mxu0 0
    %566 = vmatprep.subr.bf16.mxu0 0
    %567 = vmatpush2.bf16.msra.mxu0 0
    %568 = vmatprep.subr.bf16.mxu0 0
    %569 = vmatpush2.bf16.msra.mxu0 0
    %570 = vmatprep.subr.bf16.mxu0 0
    %571 = vmatpush2.bf16.msra.mxu0 0
    %572 = vmatprep.subr.bf16.mxu0 0
    %573 = vmatpush2.bf16.msra.mxu0 0
    %574 = vmatprep.subr.bf16.mxu0 0
    %575 = vmatpush2.bf16.msra.mxu0 0
    %576 = vmatprep.subr.bf16.mxu0 0
    %577 = vmatpush2.bf16.msra.mxu0 0
    %578 = vmatprep.mubr.bf16.mxu0 0
    %579 = vmatmul.mubr.bf16.gmra.mxu0 %v529
    %v580 = vpop.f32.mrf.mxu0
    %v581 = vadd.f32 0.0, %v580
    %v582 = vpop.f32.mrf.mxu0
    %v583 = vadd.f32 0.0, %v582
    %v584 = vpop.f32.mrf.mxu0
    %v585 = vadd.f32 0.0, %v584
    %v586 = vpop.f32.mrf.mxu0
    %v587 = vadd.f32 0.0, %v586
    %588 = vmatprep.mubr.bf16.mxu0 0
    %589 = vmatmul.mubr.bf16.gmra.mxu0 %v532
    %v590 = vpop.f32.mrf.mxu0
    %v591 = vadd.f32 0.0, %v590
    %v592 = vpop.f32.mrf.mxu0
    %v593 = vadd.f32 0.0, %v592
    %v594 = vpop.f32.mrf.mxu0
    %v595 = vadd.f32 0.0, %v594
    %v596 = vpop.f32.mrf.mxu0
    %v597 = vadd.f32 0.0, %v596
    %598 = vmatprep.mubr.bf16.mxu0 0
    %599 = vmatmul.mubr.bf16.gmra.mxu0 %v535
    %v600 = vpop.f32.mrf.mxu0
    %v601 = vadd.f32 0.0, %v600
    %v602 = vpop.f32.mrf.mxu0
    %v603 = vadd.f32 0.0, %v602
    %v604 = vpop.f32.mrf.mxu0
    %v605 = vadd.f32 0.0, %v604
    %v606 = vpop.f32.mrf.mxu0
    %v607 = vadd.f32 0.0, %v606
    %608 = vmatprep.mubr.bf16.mxu0 0
    %609 = vmatmul.mubr.bf16.gmra.mxu0 %v538
    %v610 = vpop.f32.mrf.mxu0
    %v611 = vadd.f32 0.0, %v610
    %v612 = vpop.f32.mrf.mxu0
    %v613 = vadd.f32 0.0, %v612
    %v614 = vpop.f32.mrf.mxu0
    %v615 = vadd.f32 0.0, %v614
    %v616 = vpop.f32.mrf.mxu0
    %v617 = vadd.f32 0.0, %v616
    %618 = vdwg.mxu0
    %v619 = vadd.f32 %v432, %v581
    %v620 = vadd.f32 %v434, %v583
    %v621 = vadd.f32 %v436, %v585
    %v622 = vadd.f32 %v438, %v587
    %v623 = vadd.f32 %v442, %v591
    %v624 = vadd.f32 %v444, %v593
    %v625 = vadd.f32 %v446, %v595
    %v626 = vadd.f32 %v448, %v597
    %v627 = vadd.f32 %v452, %v601
    %v628 = vadd.f32 %v454, %v603
    %v629 = vadd.f32 %v456, %v605
    %v630 = vadd.f32 %v458, %v607
    %v631 = vadd.f32 %v462, %v611
    %v632 = vadd.f32 %v464, %v613
    %v633 = vadd.f32 %v466, %v615
    %v634 = vadd.f32 %v468, %v617
    %v635 = vld [vmem:[%s2] sm:$0x3]
    %v637 = vlaneseq
    %v638 = vshrl.u32 %v637, 7
    %v639 = vsub.s32 0, %v638
    %v640 = vrot.slane %v635, %v639
    %v641 = vlaneseq
    %v642 = vshrl.u32 %v641, 7
    %v643 = vsub.s32 1, %v642
    %v644 = vrot.slane %v635, %v643
    %v647 = vadd.f32 %v619, %v640
    %v648 = vadd.f32 %v620, %v644
    %v649 = vadd.f32 %v621, %v640
    %v650 = vadd.f32 %v622, %v644
    %v651 = vadd.f32 %v623, %v640
    %v652 = vadd.f32 %v624, %v644
    %v653 = vadd.f32 %v625, %v640
    %v654 = vadd.f32 %v626, %v644
    %v655 = vadd.f32 %v627, %v640
    %v656 = vadd.f32 %v628, %v644
    %v657 = vadd.f32 %v629, %v640
    %v658 = vadd.f32 %v630, %v644
    %v659 = vadd.f32 %v631, %v640
    %v660 = vadd.f32 %v632, %v644
    %v661 = vadd.f32 %v633, %v640
    %v662 = vadd.f32 %v634, %v644
    %vm663 = vcmp.ge.f32.partialorder %v647, 0.0
    %vm664 = vcmp.ge.f32.partialorder %v648, 0.0
    %vm665 = vcmp.ge.f32.partialorder %v649, 0.0
    %vm666 = vcmp.ge.f32.partialorder %v650, 0.0
    %vm667 = vcmp.ge.f32.partialorder %v651, 0.0
    %vm668 = vcmp.ge.f32.partialorder %v652, 0.0
    %vm669 = vcmp.ge.f32.partialorder %v653, 0.0
    %vm670 = vcmp.ge.f32.partialorder %v654, 0.0
    %vm671 = vcmp.ge.f32.partialorder %v655, 0.0
    %vm672 = vcmp.ge.f32.partialorder %v656, 0.0
    %vm673 = vcmp.ge.f32.partialorder %v657, 0.0
    %vm674 = vcmp.ge.f32.partialorder %v658, 0.0
    %vm675 = vcmp.ge.f32.partialorder %v659, 0.0
    %vm676 = vcmp.ge.f32.partialorder %v660, 0.0
    %vm677 = vcmp.ge.f32.partialorder %v661, 0.0
    %vm678 = vcmp.ge.f32.partialorder %v662, 0.0
    %v680 = vlaneseq
    %v681 = vshrl.u32 %v680, 7
    %v682 = vsub.s32 0, %v681
    %v683 = vrot.slane %v66, %v682
    %v684 = vlaneseq
    %v685 = vshrl.u32 %v684, 7
    %v686 = vsub.s32 1, %v685
    %v687 = vrot.slane %v66, %v686
    %v690 = vmul.f32 %v647, %v683
    %v691 = vmul.f32 %v648, %v687
    %v692 = vmul.f32 %v649, %v683
    %v693 = vmul.f32 %v650, %v687
    %v694 = vmul.f32 %v651, %v683
    %v695 = vmul.f32 %v652, %v687
    %v696 = vmul.f32 %v653, %v683
    %v697 = vmul.f32 %v654, %v687
    %v698 = vmul.f32 %v655, %v683
    %v699 = vmul.f32 %v656, %v687
    %v700 = vmul.f32 %v657, %v683
    %v701 = vmul.f32 %v658, %v687
    %v702 = vmul.f32 %v659, %v683
    %v703 = vmul.f32 %v660, %v687
    %v704 = vmul.f32 %v661, %v683
    %v705 = vmul.f32 %v662, %v687
    %v706 = vsel %vm663, %v647, %v690
    %v707 = vsel %vm664, %v648, %v691
    %v708 = vsel %vm665, %v649, %v692
    %v709 = vsel %vm666, %v650, %v693
    %v710 = vsel %vm667, %v651, %v694
    %v711 = vsel %vm668, %v652, %v695
    %v712 = vsel %vm669, %v653, %v696
    %v713 = vsel %vm670, %v654, %v697
    %v714 = vsel %vm671, %v655, %v698
    %v715 = vsel %vm672, %v656, %v699
    %v716 = vsel %vm673, %v657, %v700
    %v717 = vsel %vm674, %v658, %v701
    %v718 = vsel %vm675, %v659, %v702
    %v719 = vsel %vm676, %v660, %v703
    %v720 = vsel %vm677, %v661, %v704
    %v721 = vsel %vm678, %v662, %v705
    %v722 = vrot.slane %v706, 4
    %v723 = vadd.f32 %v706, %v722
    %v724 = vrot.slane %v723, 2
    %v725 = vadd.f32 %v723, %v724
    %v726 = vrot.slane %v725, 1
    %v727 = vadd.f32 %v725, %v726
    %v728 = vrot.slane %v707, 4
    %v729 = vadd.f32 %v707, %v728
    %v730 = vrot.slane %v729, 2
    %v731 = vadd.f32 %v729, %v730
    %v732 = vrot.slane %v731, 1
    %v733 = vadd.f32 %v731, %v732
    %v734 = vrot.slane %v708, 4
    %v735 = vadd.f32 %v708, %v734
    %v736 = vrot.slane %v735, 2
    %v737 = vadd.f32 %v735, %v736
    %v738 = vrot.slane %v737, 1
    %v739 = vadd.f32 %v737, %v738
    %v740 = vrot.slane %v709, 4
    %v741 = vadd.f32 %v709, %v740
    %v742 = vrot.slane %v741, 2
    %v743 = vadd.f32 %v741, %v742
    %v744 = vrot.slane %v743, 1
    %v745 = vadd.f32 %v743, %v744
    %v746 = vrot.slane %v710, 4
    %v747 = vadd.f32 %v710, %v746
    %v748 = vrot.slane %v747, 2
    %v749 = vadd.f32 %v747, %v748
    %v750 = vrot.slane %v749, 1
    %v751 = vadd.f32 %v749, %v750
    %v752 = vrot.slane %v711, 4
    %v753 = vadd.f32 %v711, %v752
    %v754 = vrot.slane %v753, 2
    %v755 = vadd.f32 %v753, %v754
    %v756 = vrot.slane %v755, 1
    %v757 = vadd.f32 %v755, %v756
    %v758 = vrot.slane %v712, 4
    %v759 = vadd.f32 %v712, %v758
    %v760 = vrot.slane %v759, 2
    %v761 = vadd.f32 %v759, %v760
    %v762 = vrot.slane %v761, 1
    %v763 = vadd.f32 %v761, %v762
    %v764 = vrot.slane %v713, 4
    %v765 = vadd.f32 %v713, %v764
    %v766 = vrot.slane %v765, 2
    %v767 = vadd.f32 %v765, %v766
    %v768 = vrot.slane %v767, 1
    %v769 = vadd.f32 %v767, %v768
    %v770 = vrot.slane %v714, 4
    %v771 = vadd.f32 %v714, %v770
    %v772 = vrot.slane %v771, 2
    %v773 = vadd.f32 %v771, %v772
    %v774 = vrot.slane %v773, 1
    %v775 = vadd.f32 %v773, %v774
    %v776 = vrot.slane %v715, 4
    %v777 = vadd.f32 %v715, %v776
    %v778 = vrot.slane %v777, 2
    %v779 = vadd.f32 %v777, %v778
    %v780 = vrot.slane %v779, 1
    %v781 = vadd.f32 %v779, %v780
    %v782 = vrot.slane %v716, 4
    %v783 = vadd.f32 %v716, %v782
    %v784 = vrot.slane %v783, 2
    %v785 = vadd.f32 %v783, %v784
    %v786 = vrot.slane %v785, 1
    %v787 = vadd.f32 %v785, %v786
    %v788 = vrot.slane %v717, 4
    %v789 = vadd.f32 %v717, %v788
    %v790 = vrot.slane %v789, 2
    %v791 = vadd.f32 %v789, %v790
    %v792 = vrot.slane %v791, 1
    %v793 = vadd.f32 %v791, %v792
    %v794 = vrot.slane %v718, 4
    %v795 = vadd.f32 %v718, %v794
    %v796 = vrot.slane %v795, 2
    %v797 = vadd.f32 %v795, %v796
    %v798 = vrot.slane %v797, 1
    %v799 = vadd.f32 %v797, %v798
    %v800 = vrot.slane %v719, 4
    %v801 = vadd.f32 %v719, %v800
    %v802 = vrot.slane %v801, 2
    %v803 = vadd.f32 %v801, %v802
    %v804 = vrot.slane %v803, 1
    %v805 = vadd.f32 %v803, %v804
    %v806 = vrot.slane %v720, 4
    %v807 = vadd.f32 %v720, %v806
    %v808 = vrot.slane %v807, 2
    %v809 = vadd.f32 %v807, %v808
    %v810 = vrot.slane %v809, 1
    %v811 = vadd.f32 %v809, %v810
    %v812 = vrot.slane %v721, 4
    %v813 = vadd.f32 %v721, %v812
    %v814 = vrot.slane %v813, 2
    %v815 = vadd.f32 %v813, %v814
    %v816 = vrot.slane %v815, 1
    %v817 = vadd.f32 %v815, %v816
    %v818 = vrcp.pop 8.0
    %v819 = vmul.f32 %v727, %v818
    %v820 = vmul.f32 %v733, %v818
    %v821 = vmul.f32 %v739, %v818
    %v822 = vmul.f32 %v745, %v818
    %v823 = vmul.f32 %v751, %v818
    %v824 = vmul.f32 %v757, %v818
    %v825 = vmul.f32 %v763, %v818
    %v826 = vmul.f32 %v769, %v818
    %v827 = vmul.f32 %v775, %v818
    %v828 = vmul.f32 %v781, %v818
    %v829 = vmul.f32 %v787, %v818
    %v830 = vmul.f32 %v793, %v818
    %v831 = vmul.f32 %v799, %v818
    %v832 = vmul.f32 %v805, %v818
    %v833 = vmul.f32 %v811, %v818
    %v834 = vmul.f32 %v817, %v818
    %v835 = vpack.c.bf16 %v819, %v819
    %v836 = vpack.c.bf16 %v820, %v820
    %v837 = vpack.c.bf16 %v821, %v821
    %v838 = vpack.c.bf16 %v822, %v822
    %v839 = vpack.c.bf16 %v823, %v823
    %v840 = vpack.c.bf16 %v824, %v824
    %v841 = vpack.c.bf16 %v825, %v825
    %v842 = vpack.c.bf16 %v826, %v826
    %v843 = vpack.c.bf16 %v827, %v827
    %v844 = vpack.c.bf16 %v828, %v828
    %v845 = vpack.c.bf16 %v829, %v829
    %v846 = vpack.c.bf16 %v830, %v830
    %v847 = vpack.c.bf16 %v831, %v831
    %v848 = vpack.c.bf16 %v832, %v832
    %v849 = vpack.c.bf16 %v833, %v833
    %v850 = vpack.c.bf16 %v834, %v834
    %v851 = vld [vmem:[#allocation3] sm:$0xff]
    %v852 = vld [vmem:[#allocation3 + $0x8] sm:$0xff]
    %v853 = vld [vmem:[#allocation3 + $0x10] sm:$0xff]
    %v854 = vld [vmem:[#allocation3 + $0x18] sm:$0xff]
    %v855 = vld [vmem:[#allocation3 + $0x20] sm:$0xff]
    %v856 = vld [vmem:[#allocation3 + $0x28] sm:$0xff]
    %v857 = vld [vmem:[#allocation3 + $0x30] sm:$0xff]
    %v858 = vld [vmem:[#allocation3 + $0x38] sm:$0xff]
    %v859 = vld [vmem:[#allocation3 + $0x40] sm:$0xff]
    %v860 = vld [vmem:[#allocation3 + $0x48] sm:$0xff]
    %v861 = vld [vmem:[#allocation3 + $0x50] sm:$0xff]
    %v862 = vld [vmem:[#allocation3 + $0x58] sm:$0xff]
    %v863 = vld [vmem:[#allocation3 + $0x60] sm:$0xff]
    %v864 = vld [vmem:[#allocation3 + $0x68] sm:$0xff]
    %v865 = vld [vmem:[#allocation3 + $0x70] sm:$0xff]
    %v866 = vld [vmem:[#allocation3 + $0x78] sm:$0xff]
    %v867 = vld [vmem:[#allocation3 + $0x80] sm:$0xff]
    %v868 = vld [vmem:[#allocation3 + $0x88] sm:$0xff]
    %v869 = vld [vmem:[#allocation3 + $0x90] sm:$0xff]
    %v870 = vld [vmem:[#allocation3 + $0x98] sm:$0xff]
    %v871 = vld [vmem:[#allocation3 + $0xa0] sm:$0xff]
    %v872 = vld [vmem:[#allocation3 + $0xa8] sm:$0xff]
    %v873 = vld [vmem:[#allocation3 + $0xb0] sm:$0xff]
    %v874 = vld [vmem:[#allocation3 + $0xb8] sm:$0xff]
    %v875 = vld [vmem:[#allocation3 + $0xc0] sm:$0xff]
    %v876 = vld [vmem:[#allocation3 + $0xc8] sm:$0xff]
    %v877 = vld [vmem:[#allocation3 + $0xd0] sm:$0xff]
    %v878 = vld [vmem:[#allocation3 + $0xd8] sm:$0xff]
    %v879 = vld [vmem:[#allocation3 + $0xe0] sm:$0xff]
    %v880 = vld [vmem:[#allocation3 + $0xe8] sm:$0xff]
    %v881 = vld [vmem:[#allocation3 + $0xf0] sm:$0xff]
    %v882 = vld [vmem:[#allocation3 + $0xf8] sm:$0xff]
    %v883 = vld [vmem:[%s5] sm:$0x3]
    %v885 = vlaneseq
    %v886 = vshrl.u32 %v885, 7
    %v887 = vsub.s32 0, %v886
    %v888 = vrot.slane %v883, %v887
    %v889 = vlaneseq
    %v890 = vshrl.u32 %v889, 7
    %v891 = vsub.s32 1, %v890
    %v892 = vrot.slane %v883, %v891
    %v911 = vunpack.c.l.b16 %v835
    %v912 = vunpack.c.l.b16 %v836
    %v913 = vunpack.c.l.b16 %v837
    %v914 = vunpack.c.l.b16 %v838
    %v915 = vunpack.c.l.b16 %v839
    %v916 = vunpack.c.l.b16 %v840
    %v917 = vunpack.c.l.b16 %v841
    %v918 = vunpack.c.l.b16 %v842
    %v919 = vunpack.c.l.b16 %v843
    %v920 = vunpack.c.l.b16 %v844
    %v921 = vunpack.c.l.b16 %v845
    %v922 = vunpack.c.l.b16 %v846
    %v923 = vunpack.c.l.b16 %v847
    %v924 = vunpack.c.l.b16 %v848
    %v925 = vunpack.c.l.b16 %v849
    %v926 = vunpack.c.l.b16 %v850
    %vm927 = vcmask 1041409
    %v928 = vsel %vm927, %v913, %v911
    %vm929 = vcmask 1042434
    %v930 = vsel %vm929, %v915, %v928
    %vm931 = vcmask 1043459
    %v932 = vsel %vm931, %v917, %v930
    %vm933 = vcmask 1044484
    %v934 = vsel %vm933, %v919, %v932
    %vm935 = vcmask 1045509
    %v936 = vsel %vm935, %v921, %v934
    %vm937 = vcmask 1046534
    %v938 = vsel %vm937, %v923, %v936
    %vm939 = vcmask 1047559
    %v940 = vsel %vm939, %v925, %v938
    %v941 = vsel %vm927, %v914, %v912
    %v942 = vsel %vm929, %v916, %v941
    %v943 = vsel %vm931, %v918, %v942
    %v944 = vsel %vm933, %v920, %v943
    %v945 = vsel %vm935, %v922, %v944
    %v946 = vsel %vm937, %v924, %v945
    %v947 = vsel %vm939, %v926, %v946
    %v948 = vpack.c.b16 %v940, %v940
    %v949 = vpack.c.b16 %v947, %v947
    %v984 = vunpack.c.l.b16 %v851
    %v985 = vunpack.c.h.b16 %v851
    %v986 = vunpack.c.l.b16 %v852
    %v987 = vunpack.c.h.b16 %v852
    %v988 = vunpack.c.l.b16 %v853
    %v989 = vunpack.c.h.b16 %v853
    %v990 = vunpack.c.l.b16 %v854
    %v991 = vunpack.c.h.b16 %v854
    %v992 = vunpack.c.l.b16 %v855
    %v993 = vunpack.c.h.b16 %v855
    %v994 = vunpack.c.l.b16 %v856
    %v995 = vunpack.c.h.b16 %v856
    %v996 = vunpack.c.l.b16 %v857
    %v997 = vunpack.c.h.b16 %v857
    %v998 = vunpack.c.l.b16 %v858
    %v999 = vunpack.c.h.b16 %v858
    %v1000 = vunpack.c.l.b16 %v859
    %v1001 = vunpack.c.h.b16 %v859
    %v1002 = vunpack.c.l.b16 %v860
    %v1003 = vunpack.c.h.b16 %v860
    %v1004 = vunpack.c.l.b16 %v861
    %v1005 = vunpack.c.h.b16 %v861
    %v1006 = vunpack.c.l.b16 %v862
    %v1007 = vunpack.c.h.b16 %v862
    %v1008 = vunpack.c.l.b16 %v863
    %v1009 = vunpack.c.h.b16 %v863
    %v1010 = vunpack.c.l.b16 %v864
    %v1011 = vunpack.c.h.b16 %v864
    %v1012 = vunpack.c.l.b16 %v865
    %v1013 = vunpack.c.h.b16 %v865
    %v1014 = vunpack.c.l.b16 %v866
    %v1015 = vunpack.c.h.b16 %v866
    %v1016 = vunpack.c.l.b16 %v867
    %v1017 = vunpack.c.h.b16 %v867
    %v1018 = vunpack.c.l.b16 %v868
    %v1019 = vunpack.c.h.b16 %v868
    %v1020 = vunpack.c.l.b16 %v869
    %v1021 = vunpack.c.h.b16 %v869
    %v1022 = vunpack.c.l.b16 %v870
    %v1023 = vunpack.c.h.b16 %v870
    %v1024 = vunpack.c.l.b16 %v871
    %v1025 = vunpack.c.h.b16 %v871
    %v1026 = vunpack.c.l.b16 %v872
    %v1027 = vunpack.c.h.b16 %v872
    %v1028 = vunpack.c.l.b16 %v873
    %v1029 = vunpack.c.h.b16 %v873
    %v1030 = vunpack.c.l.b16 %v874
    %v1031 = vunpack.c.h.b16 %v874
    %v1032 = vunpack.c.l.b16 %v875
    %v1033 = vunpack.c.h.b16 %v875
    %v1034 = vunpack.c.l.b16 %v876
    %v1035 = vunpack.c.h.b16 %v876
    %v1036 = vunpack.c.l.b16 %v877
    %v1037 = vunpack.c.h.b16 %v877
    %v1038 = vunpack.c.l.b16 %v878
    %v1039 = vunpack.c.h.b16 %v878
    %v1040 = vunpack.c.l.b16 %v879
    %v1041 = vunpack.c.h.b16 %v879
    %v1042 = vunpack.c.l.b16 %v880
    %v1043 = vunpack.c.h.b16 %v880
    %v1044 = vunpack.c.l.b16 %v881
    %v1045 = vunpack.c.h.b16 %v881
    %v1046 = vunpack.c.l.b16 %v882
    %v1047 = vunpack.c.h.b16 %v882
    %v1048 = vpack.c.b16 %v986, %v984
    %v1049 = vpack.c.b16 %v987, %v985
    %v1050 = vpack.c.b16 %v990, %v988
    %v1051 = vpack.c.b16 %v991, %v989
    %v1052 = vpack.c.b16 %v994, %v992
    %v1053 = vpack.c.b16 %v995, %v993
    %v1054 = vpack.c.b16 %v998, %v996
    %v1055 = vpack.c.b16 %v999, %v997
    %v1056 = vpack.c.b16 %v1002, %v1000
    %v1057 = vpack.c.b16 %v1003, %v1001
    %v1058 = vpack.c.b16 %v1006, %v1004
    %v1059 = vpack.c.b16 %v1007, %v1005
    %v1060 = vpack.c.b16 %v1010, %v1008
    %v1061 = vpack.c.b16 %v1011, %v1009
    %v1062 = vpack.c.b16 %v1014, %v1012
    %v1063 = vpack.c.b16 %v1015, %v1013
    %v1064 = vpack.c.b16 %v1018, %v1016
    %v1065 = vpack.c.b16 %v1019, %v1017
    %v1066 = vpack.c.b16 %v1022, %v1020
    %v1067 = vpack.c.b16 %v1023, %v1021
    %v1068 = vpack.c.b16 %v1026, %v1024
    %v1069 = vpack.c.b16 %v1027, %v1025
    %v1070 = vpack.c.b16 %v1030, %v1028
    %v1071 = vpack.c.b16 %v1031, %v1029
    %v1072 = vpack.c.b16 %v1034, %v1032
    %v1073 = vpack.c.b16 %v1035, %v1033
    %v1074 = vpack.c.b16 %v1038, %v1036
    %v1075 = vpack.c.b16 %v1039, %v1037
    %v1076 = vpack.c.b16 %v1042, %v1040
    %v1077 = vpack.c.b16 %v1043, %v1041
    %v1078 = vpack.c.b16 %v1046, %v1044
    %v1079 = vpack.c.b16 %v1047, %v1045
    %1112 = vmatprep.subr.bf16.mxu0 %v1063
    %1113 = vmatpush1.bf16.msra.mxu0 %v1062
    %1114 = vmatprep.subr.bf16.mxu0 %v1061
    %1115 = vmatpush1.bf16.msra.mxu0 %v1060
    %1116 = vmatprep.subr.bf16.mxu0 %v1059
    %1117 = vmatpush1.bf16.msra.mxu0 %v1058
    %1118 = vmatprep.subr.bf16.mxu0 %v1057
    %1119 = vmatpush1.bf16.msra.mxu0 %v1056
    %1120 = vmatprep.subr.bf16.mxu0 %v1055
    %1121 = vmatpush1.bf16.msra.mxu0 %v1054
    %1122 = vmatprep.subr.bf16.mxu0 %v1053
    %1123 = vmatpush1.bf16.msra.mxu0 %v1052
    %1124 = vmatprep.subr.bf16.mxu0 %v1051
    %1125 = vmatpush1.bf16.msra.mxu0 %v1050
    %1126 = vmatprep.subr.bf16.mxu0 %v1049
    %1127 = vmatpush1.bf16.msra.mxu0 %v1048
    %1128 = vmatprep.subr.bf16.mxu0 %v1079
    %1129 = vmatpush2.bf16.msra.mxu0 %v1078
    %1130 = vmatprep.subr.bf16.mxu0 %v1077
    %1131 = vmatpush2.bf16.msra.mxu0 %v1076
    %1132 = vmatprep.subr.bf16.mxu0 %v1075
    %1133 = vmatpush2.bf16.msra.mxu0 %v1074
    %1134 = vmatprep.subr.bf16.mxu0 %v1073
    %1135 = vmatpush2.bf16.msra.mxu0 %v1072
    %1136 = vmatprep.subr.bf16.mxu0 %v1071
    %1137 = vmatpush2.bf16.msra.mxu0 %v1070
    %1138 = vmatprep.subr.bf16.mxu0 %v1069
    %1139 = vmatpush2.bf16.msra.mxu0 %v1068
    %1140 = vmatprep.subr.bf16.mxu0 %v1067
    %1141 = vmatpush2.bf16.msra.mxu0 %v1066
    %1142 = vmatprep.subr.bf16.mxu0 %v1065
    %1143 = vmatpush2.bf16.msra.mxu0 %v1064
    %1144 = vmatprep.mubr.bf16.mxu0 %v949
    %1145 = vmatmul.mubr.bf16.gmra.mxu0 %v948
    %v1146 = vpop.f32.mrf.mxu0
    %v1147 = vadd.f32 %v888, %v1146
    %v1148 = vpop.f32.mrf.mxu0
    %v1149 = vadd.f32 %v892, %v1148
    %v1150 = vpop.f32.mrf.mxu0
    %v1151 = vpop.f32.mrf.mxu0
    %1152 = vdwg.mxu0
    %vm1153 = vcmp.ge.f32.partialorder %v1147, 0.0
    %vm1154 = vcmp.ge.f32.partialorder %v1149, 0.0
    %v1155 = vmul.f32 %v1147, %v683
    %v1156 = vmul.f32 %v1149, %v687
    %v1157 = vsel %vm1153, %v1147, %v1155
    %v1158 = vsel %vm1154, %v1149, %v1156
    %v1159 = vpack.c.bf16 %v1157, %v1157
    %v1160 = vpack.c.bf16 %v1158, %v1158
    %v1161 = vld [vmem:[#allocation5] sm:$0xff]
    %v1162 = vld [vmem:[#allocation5 + $0x8] sm:$0xff]
    %v1163 = vld [vmem:[#allocation5 + $0x10] sm:$0xff]
    %v1164 = vld [vmem:[#allocation5 + $0x18] sm:$0xff]
    %v1165 = vld [vmem:[#allocation5 + $0x20] sm:$0xff]
    %v1166 = vld [vmem:[#allocation5 + $0x28] sm:$0xff]
    %v1167 = vld [vmem:[#allocation5 + $0x30] sm:$0xff]
    %v1168 = vld [vmem:[#allocation5 + $0x38] sm:$0xff]
    %v1169 = vld [vmem:[#allocation5 + $0x40] sm:$0xff]
    %v1170 = vld [vmem:[#allocation5 + $0x48] sm:$0xff]
    %v1171 = vld [vmem:[#allocation5 + $0x50] sm:$0xff]
    %v1172 = vld [vmem:[#allocation5 + $0x58] sm:$0xff]
    %v1173 = vld [vmem:[#allocation5 + $0x60] sm:$0xff]
    %v1174 = vld [vmem:[#allocation5 + $0x68] sm:$0xff]
    %v1175 = vld [vmem:[#allocation5 + $0x70] sm:$0xff]
    %v1176 = vld [vmem:[#allocation5 + $0x78] sm:$0xff]
    %v1177 = vld [vmem:[#allocation5 + $0x80] sm:$0xff]
    %v1178 = vld [vmem:[#allocation5 + $0x88] sm:$0xff]
    %v1179 = vld [vmem:[#allocation5 + $0x90] sm:$0xff]
    %v1180 = vld [vmem:[#allocation5 + $0x98] sm:$0xff]
    %v1181 = vld [vmem:[#allocation5 + $0xa0] sm:$0xff]
    %v1182 = vld [vmem:[#allocation5 + $0xa8] sm:$0xff]
    %v1183 = vld [vmem:[#allocation5 + $0xb0] sm:$0xff]
    %v1184 = vld [vmem:[#allocation5 + $0xb8] sm:$0xff]
    %v1185 = vld [vmem:[#allocation5 + $0xc0] sm:$0xff]
    %v1186 = vld [vmem:[#allocation5 + $0xc8] sm:$0xff]
    %v1187 = vld [vmem:[#allocation5 + $0xd0] sm:$0xff]
    %v1188 = vld [vmem:[#allocation5 + $0xd8] sm:$0xff]
    %v1189 = vld [vmem:[#allocation5 + $0xe0] sm:$0xff]
    %v1190 = vld [vmem:[#allocation5 + $0xe8] sm:$0xff]
    %v1191 = vld [vmem:[#allocation5 + $0xf0] sm:$0xff]
    %v1192 = vld [vmem:[#allocation5 + $0xf8] sm:$0xff]
    %v1193 = vld [vmem:[%s7] sm:$0x3]
    %v1195 = vlaneseq
    %v1196 = vshrl.u32 %v1195, 7
    %v1197 = vsub.s32 0, %v1196
    %v1198 = vrot.slane %v1193, %v1197
    %v1199 = vlaneseq
    %v1200 = vshrl.u32 %v1199, 7
    %v1201 = vsub.s32 1, %v1200
    %v1202 = vrot.slane %v1193, %v1201
    %v1237 = vunpack.c.l.b16 %v1161
    %v1238 = vunpack.c.h.b16 %v1161
    %v1239 = vunpack.c.l.b16 %v1162
    %v1240 = vunpack.c.h.b16 %v1162
    %v1241 = vunpack.c.l.b16 %v1163
    %v1242 = vunpack.c.h.b16 %v1163
    %v1243 = vunpack.c.l.b16 %v1164
    %v1244 = vunpack.c.h.b16 %v1164
    %v1245 = vunpack.c.l.b16 %v1165
    %v1246 = vunpack.c.h.b16 %v1165
    %v1247 = vunpack.c.l.b16 %v1166
    %v1248 = vunpack.c.h.b16 %v1166
    %v1249 = vunpack.c.l.b16 %v1167
    %v1250 = vunpack.c.h.b16 %v1167
    %v1251 = vunpack.c.l.b16 %v1168
    %v1252 = vunpack.c.h.b16 %v1168
    %v1253 = vunpack.c.l.b16 %v1169
    %v1254 = vunpack.c.h.b16 %v1169
    %v1255 = vunpack.c.l.b16 %v1170
    %v1256 = vunpack.c.h.b16 %v1170
    %v1257 = vunpack.c.l.b16 %v1171
    %v1258 = vunpack.c.h.b16 %v1171
    %v1259 = vunpack.c.l.b16 %v1172
    %v1260 = vunpack.c.h.b16 %v1172
    %v1261 = vunpack.c.l.b16 %v1173
    %v1262 = vunpack.c.h.b16 %v1173
    %v1263 = vunpack.c.l.b16 %v1174
    %v1264 = vunpack.c.h.b16 %v1174
    %v1265 = vunpack.c.l.b16 %v1175
    %v1266 = vunpack.c.h.b16 %v1175
    %v1267 = vunpack.c.l.b16 %v1176
    %v1268 = vunpack.c.h.b16 %v1176
    %v1269 = vunpack.c.l.b16 %v1177
    %v1270 = vunpack.c.h.b16 %v1177
    %v1271 = vunpack.c.l.b16 %v1178
    %v1272 = vunpack.c.h.b16 %v1178
    %v1273 = vunpack.c.l.b16 %v1179
    %v1274 = vunpack.c.h.b16 %v1179
    %v1275 = vunpack.c.l.b16 %v1180
    %v1276 = vunpack.c.h.b16 %v1180
    %v1277 = vunpack.c.l.b16 %v1181
    %v1278 = vunpack.c.h.b16 %v1181
    %v1279 = vunpack.c.l.b16 %v1182
    %v1280 = vunpack.c.h.b16 %v1182
    %v1281 = vunpack.c.l.b16 %v1183
    %v1282 = vunpack.c.h.b16 %v1183
    %v1283 = vunpack.c.l.b16 %v1184
    %v1284 = vunpack.c.h.b16 %v1184
    %v1285 = vunpack.c.l.b16 %v1185
    %v1286 = vunpack.c.h.b16 %v1185
    %v1287 = vunpack.c.l.b16 %v1186
    %v1288 = vunpack.c.h.b16 %v1186
    %v1289 = vunpack.c.l.b16 %v1187
    %v1290 = vunpack.c.h.b16 %v1187
    %v1291 = vunpack.c.l.b16 %v1188
    %v1292 = vunpack.c.h.b16 %v1188
    %v1293 = vunpack.c.l.b16 %v1189
    %v1294 = vunpack.c.h.b16 %v1189
    %v1295 = vunpack.c.l.b16 %v1190
    %v1296 = vunpack.c.h.b16 %v1190
    %v1297 = vunpack.c.l.b16 %v1191
    %v1298 = vunpack.c.h.b16 %v1191
    %v1299 = vunpack.c.l.b16 %v1192
    %v1300 = vunpack.c.h.b16 %v1192
    %v1301 = vpack.c.b16 %v1239, %v1237
    %v1302 = vpack.c.b16 %v1240, %v1238
    %v1303 = vpack.c.b16 %v1243, %v1241
    %v1304 = vpack.c.b16 %v1244, %v1242
    %v1305 = vpack.c.b16 %v1247, %v1245
    %v1306 = vpack.c.b16 %v1248, %v1246
    %v1307 = vpack.c.b16 %v1251, %v1249
    %v1308 = vpack.c.b16 %v1252, %v1250
    %v1309 = vpack.c.b16 %v1255, %v1253
    %v1310 = vpack.c.b16 %v1256, %v1254
    %v1311 = vpack.c.b16 %v1259, %v1257
    %v1312 = vpack.c.b16 %v1260, %v1258
    %v1313 = vpack.c.b16 %v1263, %v1261
    %v1314 = vpack.c.b16 %v1264, %v1262
    %v1315 = vpack.c.b16 %v1267, %v1265
    %v1316 = vpack.c.b16 %v1268, %v1266
    %v1317 = vpack.c.b16 %v1271, %v1269
    %v1318 = vpack.c.b16 %v1272, %v1270
    %v1319 = vpack.c.b16 %v1275, %v1273
    %v1320 = vpack.c.b16 %v1276, %v1274
    %v1321 = vpack.c.b16 %v1279, %v1277
    %v1322 = vpack.c.b16 %v1280, %v1278
    %v1323 = vpack.c.b16 %v1283, %v1281
    %v1324 = vpack.c.b16 %v1284, %v1282
    %v1325 = vpack.c.b16 %v1287, %v1285
    %v1326 = vpack.c.b16 %v1288, %v1286
    %v1327 = vpack.c.b16 %v1291, %v1289
    %v1328 = vpack.c.b16 %v1292, %v1290
    %v1329 = vpack.c.b16 %v1295, %v1293
    %v1330 = vpack.c.b16 %v1296, %v1294
    %v1331 = vpack.c.b16 %v1299, %v1297
    %v1332 = vpack.c.b16 %v1300, %v1298
    %1365 = vmatprep.subr.bf16.mxu0 %v1316
    %1366 = vmatpush1.bf16.msra.mxu0 %v1315
    %1367 = vmatprep.subr.bf16.mxu0 %v1314
    %1368 = vmatpush1.bf16.msra.mxu0 %v1313
    %1369 = vmatprep.subr.bf16.mxu0 %v1312
    %1370 = vmatpush1.bf16.msra.mxu0 %v1311
    %1371 = vmatprep.subr.bf16.mxu0 %v1310
    %1372 = vmatpush1.bf16.msra.mxu0 %v1309
    %1373 = vmatprep.subr.bf16.mxu0 %v1308
    %1374 = vmatpush1.bf16.msra.mxu0 %v1307
    %1375 = vmatprep.subr.bf16.mxu0 %v1306
    %1376 = vmatpush1.bf16.msra.mxu0 %v1305
    %1377 = vmatprep.subr.bf16.mxu0 %v1304
    %1378 = vmatpush1.bf16.msra.mxu0 %v1303
    %1379 = vmatprep.subr.bf16.mxu0 %v1302
    %1380 = vmatpush1.bf16.msra.mxu0 %v1301
    %1381 = vmatprep.subr.bf16.mxu0 %v1332
    %1382 = vmatpush2.bf16.msra.mxu0 %v1331
    %1383 = vmatprep.subr.bf16.mxu0 %v1330
    %1384 = vmatpush2.bf16.msra.mxu0 %v1329
    %1385 = vmatprep.subr.bf16.mxu0 %v1328
    %1386 = vmatpush2.bf16.msra.mxu0 %v1327
    %1387 = vmatprep.subr.bf16.mxu0 %v1326
    %1388 = vmatpush2.bf16.msra.mxu0 %v1325
    %1389 = vmatprep.subr.bf16.mxu0 %v1324
    %1390 = vmatpush2.bf16.msra.mxu0 %v1323
    %1391 = vmatprep.subr.bf16.mxu0 %v1322
    %1392 = vmatpush2.bf16.msra.mxu0 %v1321
    %1393 = vmatprep.subr.bf16.mxu0 %v1320
    %1394 = vmatpush2.bf16.msra.mxu0 %v1319
    %1395 = vmatprep.subr.bf16.mxu0 %v1318
    %1396 = vmatpush2.bf16.msra.mxu0 %v1317
    %1397 = vmatprep.mubr.bf16.mxu0 %v1160
    %1398 = vmatmul.mubr.bf16.gmra.mxu0 %v1159
    %v1399 = vpop.f32.mrf.mxu0
    %v1400 = vadd.f32 %v1198, %v1399
    %v1401 = vpop.f32.mrf.mxu0
    %v1402 = vadd.f32 %v1202, %v1401
    %v1403 = vpop.f32.mrf.mxu0
    %v1404 = vpop.f32.mrf.mxu0
    %1405 = vdwg.mxu0
    %vm1406 = vcmp.ge.f32.partialorder %v1400, 0.0
    %vm1407 = vcmp.ge.f32.partialorder %v1402, 0.0
    %v1408 = vmul.f32 %v1400, %v683
    %v1409 = vmul.f32 %v1402, %v687
    %v1410 = vsel %vm1406, %v1400, %v1408
    %v1411 = vsel %vm1407, %v1402, %v1409
    %v1412 = vld [vmem:[%s8] sm:$0x3]
    %v1414 = vlaneseq
    %v1415 = vshrl.u32 %v1414, 7
    %v1416 = vsub.s32 0, %v1415
    %v1417 = vrot.slane %v1412, %v1416
    %v1418 = vlaneseq
    %v1419 = vshrl.u32 %v1418, 7
    %v1420 = vsub.s32 1, %v1419
    %v1421 = vrot.slane %v1412, %v1420
    %v1424 = vmul.f32 %v1410, %v1417
    %v1425 = vmul.f32 %v1411, %v1421
    %v1426 = vadd.f32 %v1424, %v1425
    %1427 = vadd.xlane.f32.xlu0 %v1426
    %v1428 = vpop.xlane.xlu0 %1427
    %v1429 = vld [vmem:[#allocation2] sm:$0x1]
    %v1431 = vlaneseq
    %v1432 = vshrl.u32 %v1431, 7
    %v1433 = vsub.s32 0, %v1432
    %v1434 = vrot.slane %v1429, %v1433
    %v1436 = vadd.f32 %v1428, %v1434
    %vm1437 = vcmask 7168
    %1438 = vst.msk [vmem:[%s10] sm:$0xff] %vm1437, %v1436
    // Predicated region
    $region50: #{tpu_custom_call.1} parent=1 // pred_check
      _
    $region51: #{tpu_custom_call.1} parent=1 // pred_check_branch
      %1440 = sbr.rel (0) target = $region53
    $region52: #{tpu_custom_call.1} parent=1 // pred_region
      _
    $region53: #{tpu_custom_call.1} parent=1 // pred_fallthru
      _
    // Predicated region
    $region54: #{tpu_custom_call.1} parent=1 // pred_check
      _
    $region55: #{tpu_custom_call.1} parent=1 // pred_check_branch
      %1442 = sbr.rel (0) target = $region57
    $region56: #{tpu_custom_call.1} parent=1 // pred_region
      _
    $region57: #{tpu_custom_call.1} parent=1 // pred_fallthru
      _
    %1443 = vsyncpa [#allocation4], 1
    %1444 = vsyncpa [#allocation6], 1

</llo_original>
